<compile_context>
chip_gen: v6e
topology: v6e:2x2x1
jax: 0.10.0
libtpu: 0.0.40
codegen_flags: <defaults>
</compile_context>

<pallas_src>
import numpy as np
import jax
import jax.numpy as jnp
from jax import lax
from jax.experimental import pallas as pl
from jax.experimental.pallas import tpu as pltpu


def _round_up(x, m):
    return ((x + m - 1) // m) * m


# ---------------- fused kernel: value MLP + candidate gather + segment max ----------------
def fused_value_kernel(xt_ref, w1_ref, b1_ref, w2_ref, cand_ref, off_ref, end_ref, o_ref):
    # xt: (E, tm) bf16 column tile of the transposed features,
    # w1: (E_out, E_in) bf16 (torch layout), b1: (E, 1) f32, w2: (E, 1) f32,
    # cand: (C, 1) i32, off/end: (1, B) i32, o: (1, B) f32 (resident accumulator).
    i = pl.program_id(0)
    tm = xt_ref.shape[1]
    c = cand_ref.shape[0]
    b = off_ref.shape[1]
    neg = jnp.finfo(jnp.float32).min

    # ---- per-variable value MLP in the transposed (lane-dense) orientation ----
    # h[out, m] = sum_in w1[out, in] * x[m, in]  -> (E, tm), f32 accumulate on the MXU.
    h = jnp.dot(w1_ref[...], xt_ref[...], preferred_element_type=jnp.float32)
    h = jnp.maximum(h + b1_ref[...], 0.0)
    # Linear(E, 1, bias=False): VPU multiply + sublane reduce -> lane-dense (1, tm) value row.
    v = jnp.sum(h * w2_ref[...], axis=0, keepdims=True)

    # ---- gather value[candidates] for candidates that fall inside this tile (exact) ----
    local = cand_ref[...] - i * tm                                       # (C, 1)
    col = lax.broadcasted_iota(jnp.int32, (c, tm), 1)
    hit = col == local                                                   # <=1 lane per candidate
    gathered = jnp.max(jnp.where(hit, jnp.broadcast_to(v, (c, tm)), neg),
                       axis=1, keepdims=True)                            # (C, 1); neg if not here

    # ---- partial per-segment max, folded into the resident output block ----
    row = lax.broadcasted_iota(jnp.int32, (c, b), 0)
    seg = (row >= off_ref[...]) & (row < end_ref[...])
    partial = jnp.max(jnp.where(seg, jnp.broadcast_to(gathered, (c, b)), neg),
                      axis=0, keepdims=True)                             # (1, B)

    @pl.when(i == 0)
    def _():
        # Empty segments end up at float32 min (torch would raise on an empty max).
        o_ref[...] = jnp.full(o_ref.shape, neg, o_ref.dtype)

    o_ref[...] = jnp.maximum(o_ref[...], partial)


def fused_value(xt, w1, b1_col, w2_col, cand_col, off_row, end_row, *, tm):
    e, npad = xt.shape
    c = cand_col.shape[0]
    b = off_row.shape[1]
    assert npad % tm == 0
    return pl.pallas_call(
        fused_value_kernel,
        out_shape=jax.ShapeDtypeStruct((1, b), jnp.float32),
        grid=(npad // tm,),
        in_specs=[
            pl.BlockSpec((e, tm), lambda i: (0, i)),   # transposed feature tile (lane-dense)
            pl.BlockSpec((e, e), lambda i: (0, 0)),    # w1 (resident)
            pl.BlockSpec((e, 1), lambda i: (0, 0)),    # b1 column
            pl.BlockSpec((e, 1), lambda i: (0, 0)),    # w2 column
            pl.BlockSpec((c, 1), lambda i: (0, 0)),    # candidate indices
            pl.BlockSpec((1, b), lambda i: (0, 0)),    # segment offsets
            pl.BlockSpec((1, b), lambda i: (0, 0)),    # segment ends (off + len, hoisted)
        ],
        out_specs=pl.BlockSpec((1, b), lambda i: (0, 0)),
        compiler_params=pltpu.CompilerParams(dimension_semantics=("arbitrary",)),
    )(xt, w1, b1_col, w2_col, cand_col, off_row, end_row)


# --------------------------------------- Value module ---------------------------------------
def value_forward(params, state):
    (constraint_features, edge_indices, edge_features,
     variable_features, candidates, nb_candidates) = state
    # TODO(synk): `encoder` is an injected external GNN module; variable_features are assumed
    # to already be the encoder output of shape [N, emb_size].
    x = variable_features
    w1, b1, w2 = params                       # torch layouts: (E,E)[out,in], (E,), (1,E)

    n, e = x.shape
    tm = min(512, _round_up(n, 128))          # lane-dim tile; big tiles amortize per-step overhead
    npad = _round_up(n, tm)
    if npad != n:
        # Padded columns get a deterministic dummy value but are never indexed by `candidates`.
        x = jnp.concatenate([x, jnp.zeros((npad - n, e), x.dtype)], axis=0)
    # bf16 cast fused with the pad+transpose pass (ideally the encoder emits (E, N) bf16 directly).
    xt = x.astype(jnp.bfloat16).T             # (E, Npad)

    c = candidates.shape[0]
    b = nb_candidates.shape[0]
    lengths = nb_candidates.astype(jnp.int32)
    offsets = jnp.concatenate([jnp.zeros((1,), jnp.int32), jnp.cumsum(lengths)[:-1]])
    ends = offsets + lengths

    out = fused_value(
        xt,
        w1.astype(jnp.bfloat16),              # (E,E) torch [out,in] layout, used directly
        b1.reshape(e, 1),
        w2.reshape(e, 1),                     # (1,E) -> (E,1) column
        candidates.reshape(c, 1).astype(jnp.int32),
        offsets.reshape(1, b),
        ends.reshape(1, b),
        tm=tm,
    )                                         # (1, B)
    return out.T                              # (B, 1)


if __name__ == "__main__":
    key = jax.random.PRNGKey(0)
    emb_size = 32
    n_vars = 32
    n_cons = 8
    n_edges = 16

    k1, k2, k3, k4, k5, k6 = jax.random.split(key, 6)
    variable_features = jax.random.normal(k1, (n_vars, emb_size), jnp.float32)
    constraint_features = jax.random.normal(k2, (n_cons, 4), jnp.float32)   # unused (encoder external)
    edge_indices = jax.random.randint(k3, (2, n_edges), 0, n_vars)          # unused (encoder external)
    edge_features = jax.random.normal(k4, (n_edges, 1), jnp.float32)        # unused (encoder external)

    nb_candidates = jnp.array([5, 7], jnp.int32)                            # B = 2 segments
    n_cands = int(np.asarray(nb_candidates).sum())
    candidates = jax.random.randint(k5, (n_cands,), 0, n_vars, jnp.int32)

    # Deterministic parameter init (torch.nn.Linear-style uniform bounds).
    bound = 1.0 / (emb_size ** 0.5)
    kw1, kb1, kw2 = jax.random.split(k6, 3)
    w1 = jax.random.uniform(kw1, (emb_size, emb_size), jnp.float32, -bound, bound)  # [out, in]
    b1 = jax.random.uniform(kb1, (emb_size,), jnp.float32, -bound, bound)
    w2 = jax.random.uniform(kw2, (1, emb_size), jnp.float32, -bound, bound)         # [out, in], no bias
    params = (w1, b1, w2)

    state = (constraint_features, edge_indices, edge_features,
             variable_features, candidates, nb_candidates)

    out = value_forward(params, state)
    out = jax.block_until_ready(out)
    assert out.shape == (nb_candidates.shape[0], 1), out.shape

    cand_np = np.asarray(candidates)
    split_pts = np.cumsum(np.asarray(nb_candidates))[:-1]

    # Tight check: reference mirrors the kernel's numerics (bf16 matmul inputs, f32 accumulate,
    # second layer as an f32 multiply-reduce).
    h_bf = jnp.dot(variable_features.astype(jnp.bfloat16), w1.T.astype(jnp.bfloat16),
                   preferred_element_type=jnp.float32) + b1
    h_bf = jnp.maximum(h_bf, 0.0)
    val_bf = np.asarray(jnp.sum(h_bf * w2, axis=-1))
    ref_bf = jnp.asarray([[s.max()] for s in np.split(val_bf[cand_np], split_pts)], jnp.float32)
    assert jnp.allclose(out, ref_bf, atol=1e-3, rtol=1e-3), (out, ref_bf)

    # Loose check against the pure-f32 PyTorch-semantics reference (documents expected bf16 drift).
    h_f32 = jnp.maximum(variable_features @ w1.T + b1, 0.0)
    val_f32 = np.asarray((h_f32 @ w2.T).squeeze(-1))
    ref_f32 = jnp.asarray([[s.max()] for s in np.split(val_f32[cand_np], split_pts)], jnp.float32)
    assert jnp.allclose(out, ref_f32, atol=5e-2), (out, ref_f32)

    print("KERNEL_OK")
</pallas_src>

<mosaic_0001>
module attributes {stable_mosaic.version = 11 : i64} {
  func.func @fused_value_kernel(%arg0: i32, %arg1: memref<32x128xbf16, #tpu.memory_space<vmem>>, %arg2: memref<32x32xbf16, #tpu.memory_space<vmem>>, %arg3: memref<32x1xf32, #tpu.memory_space<vmem>>, %arg4: memref<32x1xf32, #tpu.memory_space<vmem>>, %arg5: memref<12x1xi32, #tpu.memory_space<vmem>>, %arg6: memref<1x2xi32, #tpu.memory_space<vmem>>, %arg7: memref<1x2xi32, #tpu.memory_space<vmem>>, %arg8: memref<1x2xf32, #tpu.memory_space<vmem>>) attributes {dimension_semantics = [#tpu.dimension_semantics<arbitrary>], iteration_bounds = array<i64: 1>, scalar_prefetch = 0 : i64, scratch_operands = 0 : i64, tpu.core_type = #tpu.core_type<tc>, window_params = [{transform_indices = @transform_0, window_bounds = array<i64: 32, 128>}, {pipeline_mode = #tpu.pipeline_mode<synchronous>, transform_indices = @transform_1, window_bounds = array<i64: 32, 32>}, {pipeline_mode = #tpu.pipeline_mode<synchronous>, transform_indices = @transform_2, window_bounds = array<i64: 32, 1>}, {pipeline_mode = #tpu.pipeline_mode<synchronous>, transform_indices = @transform_3, window_bounds = array<i64: 32, 1>}, {pipeline_mode = #tpu.pipeline_mode<synchronous>, transform_indices = @transform_4, window_bounds = array<i64: 12, 1>}, {pipeline_mode = #tpu.pipeline_mode<synchronous>, transform_indices = @transform_5, window_bounds = array<i64: 1, 2>}, {pipeline_mode = #tpu.pipeline_mode<synchronous>, transform_indices = @transform_6, window_bounds = array<i64: 1, 2>}, {pipeline_mode = #tpu.pipeline_mode<synchronous>, transform_indices = @transform_7, window_bounds = array<i64: 1, 2>}]} {
    %c0 = arith.constant 0 : index
    %c0_0 = arith.constant 0 : index
    %0 = vector.load %arg2[%c0, %c0_0] : memref<32x32xbf16, #tpu.memory_space<vmem>>, vector<32x32xbf16>
    %c0_1 = arith.constant 0 : index
    %c0_2 = arith.constant 0 : index
    %1 = vector.load %arg1[%c0_1, %c0_2] : memref<32x128xbf16, #tpu.memory_space<vmem>>, vector<32x128xbf16>
    %cst = arith.constant dense<0.000000e+00> : vector<32x128xf32>
    %2 = tpu.matmul %0, %1, %cst {dimension_numbers = #tpu.dot_dimension_numbers<[1], [0], [0], [1], [0, 0, 1, 1], [], []>} : vector<32x32xbf16>, vector<32x128xbf16>, vector<32x128xf32> -> vector<32x128xf32>
    %c0_3 = arith.constant 0 : index
    %c0_4 = arith.constant 0 : index
    %3 = vector.load %arg3[%c0_3, %c0_4] : memref<32x1xf32, #tpu.memory_space<vmem>>, vector<32x1xf32>
    %4 = vector.broadcast %3 : vector<32x1xf32> to vector<32x128xf32>
    %5 = arith.addf %2, %4 : vector<32x128xf32>
    %cst_5 = arith.constant 0.000000e+00 : f32
    %6 = vector.broadcast %cst_5 : f32 to vector<32x128xf32>
    %7 = arith.maximumf %5, %6 : vector<32x128xf32>
    %c0_6 = arith.constant 0 : index
    %c0_7 = arith.constant 0 : index
    %8 = vector.load %arg4[%c0_6, %c0_7] : memref<32x1xf32, #tpu.memory_space<vmem>>, vector<32x1xf32>
    %9 = vector.broadcast %8 : vector<32x1xf32> to vector<32x128xf32>
    %10 = arith.mulf %7, %9 : vector<32x128xf32>
    %cst_8 = arith.constant dense<0.000000e+00> : vector<128xf32>
    %11 = vector.multi_reduction <add>, %10, %cst_8 [0] : vector<32x128xf32> to vector<128xf32>
    %12 = vector.shape_cast %11 : vector<128xf32> to vector<1x128xf32>
    %c0_9 = arith.constant 0 : index
    %c0_10 = arith.constant 0 : index
    %13 = vector.load %arg5[%c0_9, %c0_10] : memref<12x1xi32, #tpu.memory_space<vmem>>, vector<12x1xi32>
    %c128_i32 = arith.constant 128 : i32
    %14 = arith.muli %arg0, %c128_i32 : i32
    %15 = vector.broadcast %14 : i32 to vector<12x1xi32>
    %16 = arith.subi %13, %15 : vector<12x1xi32>
    %17 = tpu.iota {dimensions = array<i32: 1>} : vector<12x128xi32>
    %18 = vector.broadcast %16 : vector<12x1xi32> to vector<12x128xi32>
    %19 = arith.cmpi eq, %17, %18 : vector<12x128xi32>
    %20 = vector.shape_cast %12 : vector<1x128xf32> to vector<1x128xf32>
    %21 = vector.broadcast %20 : vector<1x128xf32> to vector<12x128xf32>
    %cst_11 = arith.constant -3.40282347E+38 : f32
    %22 = vector.broadcast %cst_11 : f32 to vector<12x128xf32>
    %23 = arith.select %19, %21, %22 : vector<12x128xi1>, vector<12x128xf32>
    %cst_12 = arith.constant dense<0xFF800000> : vector<12xf32>
    %24 = vector.multi_reduction <maximumf>, %23, %cst_12 [1] : vector<12x128xf32> to vector<12xf32>
    %25 = vector.shape_cast %24 : vector<12xf32> to vector<12x1xf32>
    %26 = tpu.iota {dimensions = array<i32: 0>} : vector<12x2xi32>
    %c0_13 = arith.constant 0 : index
    %c0_14 = arith.constant 0 : index
    %27 = vector.load %arg6[%c0_13, %c0_14] : memref<1x2xi32, #tpu.memory_space<vmem>>, vector<1x2xi32>
    %28 = vector.broadcast %27 : vector<1x2xi32> to vector<12x2xi32>
    %29 = arith.cmpi sge, %26, %28 : vector<12x2xi32>
    %c0_15 = arith.constant 0 : index
    %c0_16 = arith.constant 0 : index
    %30 = vector.load %arg7[%c0_15, %c0_16] : memref<1x2xi32, #tpu.memory_space<vmem>>, vector<1x2xi32>
    %31 = vector.broadcast %30 : vector<1x2xi32> to vector<12x2xi32>
    %32 = arith.cmpi slt, %26, %31 : vector<12x2xi32>
    %33 = arith.andi %29, %32 : vector<12x2xi1>
    %34 = vector.shape_cast %25 : vector<12x1xf32> to vector<12x1xf32>
    %35 = vector.broadcast %34 : vector<12x1xf32> to vector<12x2xf32>
    %cst_17 = arith.constant -3.40282347E+38 : f32
    %36 = vector.broadcast %cst_17 : f32 to vector<12x2xf32>
    %37 = arith.select %33, %35, %36 : vector<12x2xi1>, vector<12x2xf32>
    %cst_18 = arith.constant dense<0xFF800000> : vector<2xf32>
    %38 = vector.multi_reduction <maximumf>, %37, %cst_18 [0] : vector<12x2xf32> to vector<2xf32>
    %39 = vector.shape_cast %38 : vector<2xf32> to vector<1x2xf32>
    %c0_i32 = arith.constant 0 : i32
    %40 = arith.cmpi eq, %arg0, %c0_i32 : i32
    %41 = arith.extui %40 : i1 to i32
    %c0_i32_19 = arith.constant 0 : i32
    %42 = arith.cmpi ne, %41, %c0_i32_19 : i32
    scf.if %42 {
      %cst_24 = arith.constant -3.40282347E+38 : f32
      %46 = vector.broadcast %cst_24 : f32 to vector<1x2xf32>
      %c0_25 = arith.constant 0 : index
      %c0_26 = arith.constant 0 : index
      %47 = vector.load %arg8[%c0_25, %c0_26] : memref<1x2xf32, #tpu.memory_space<vmem>>, vector<1x2xf32>
      tpu.vector_store %arg8[%c0_25, %c0_26], %46 {strides = array<i32>} : memref<1x2xf32, #tpu.memory_space<vmem>>, vector<1x2xf32>,
    } else {
    }
    %c0_20 = arith.constant 0 : index
    %c0_21 = arith.constant 0 : index
    %43 = vector.load %arg8[%c0_20, %c0_21] : memref<1x2xf32, #tpu.memory_space<vmem>>, vector<1x2xf32>
    %44 = arith.maximumf %43, %39 : vector<1x2xf32>
    %c0_22 = arith.constant 0 : index
    %c0_23 = arith.constant 0 : index
    %45 = vector.load %arg8[%c0_22, %c0_23] : memref<1x2xf32, #tpu.memory_space<vmem>>, vector<1x2xf32>
    tpu.vector_store %arg8[%c0_22, %c0_23], %44 {strides = array<i32>} : memref<1x2xf32, #tpu.memory_space<vmem>>, vector<1x2xf32>,
    return
  }
  func.func @transform_0(%arg0: i32) -> (i32, i32) {
    %c0_i32 = arith.constant 0 : i32
    %c0_i32_0 = arith.constant 0 : i32
    return %c0_i32, %arg0 : i32, i32
  }
  func.func @transform_1(%arg0: i32) -> (i32, i32) {
    %c0_i32 = arith.constant 0 : i32
    %c0_i32_0 = arith.constant 0 : i32
    %c0_i32_1 = arith.constant 0 : i32
    return %c0_i32, %c0_i32_0 : i32, i32
  }
  func.func @transform_2(%arg0: i32) -> (i32, i32) {
    %c0_i32 = arith.constant 0 : i32
    %c0_i32_0 = arith.constant 0 : i32
    %c0_i32_1 = arith.constant 0 : i32
    return %c0_i32, %c0_i32_0 : i32, i32
  }
  func.func @transform_3(%arg0: i32) -> (i32, i32) {
    %c0_i32 = arith.constant 0 : i32
    %c0_i32_0 = arith.constant 0 : i32
    %c0_i32_1 = arith.constant 0 : i32
    return %c0_i32, %c0_i32_0 : i32, i32
  }
  func.func @transform_4(%arg0: i32) -> (i32, i32) {
    %c0_i32 = arith.constant 0 : i32
    %c0_i32_0 = arith.constant 0 : i32
    %c0_i32_1 = arith.constant 0 : i32
    return %c0_i32, %c0_i32_0 : i32, i32
  }
  func.func @transform_5(%arg0: i32) -> (i32, i32) {
    %c0_i32 = arith.constant 0 : i32
    %c0_i32_0 = arith.constant 0 : i32
    %c0_i32_1 = arith.constant 0 : i32
    return %c0_i32, %c0_i32_0 : i32, i32
  }
  func.func @transform_6(%arg0: i32) -> (i32, i32) {
    %c0_i32 = arith.constant 0 : i32
    %c0_i32_0 = arith.constant 0 : i32
    %c0_i32_1 = arith.constant 0 : i32
    return %c0_i32, %c0_i32_0 : i32, i32
  }
  func.func @transform_7(%arg0: i32) -> (i32, i32) {
    %c0_i32 = arith.constant 0 : i32
    %c0_i32_0 = arith.constant 0 : i32
    %c0_i32_1 = arith.constant 0 : i32
    return %c0_i32, %c0_i32_0 : i32, i32
  }
}

</mosaic_0001>

<llo_original>
// kernel: tpu_custom_call.1
$region0: #{tpu_custom_call.1}
  #allocation0 [shape = 'u32[]', space=smem, size = 0x4, offset = 0x4, fixed_abs, tag = 'smem constant byte address 0x4 - core index']
  #allocation1 [shape = 'u32[144,128]{1,0:T(1,128)}', space=vmem, size = 0x12000, scoped, tag = 'internal scratch']
  %s0 = inlined_call_operand.vmem [shape: bf16[32,128], index: 0, kind: input, shape index: {}]
  %s1 = inlined_call_operand.vmem [shape: bf16[32,32], index: 1, kind: input, shape index: {}]
  %s2 = inlined_call_operand.vmem [shape: f32[32,1], index: 2, kind: input, shape index: {}]
  %s3 = inlined_call_operand.vmem [shape: f32[32,1], index: 3, kind: input, shape index: {}]
  %s4 = inlined_call_operand.vmem [shape: s32[12,1], index: 4, kind: input, shape index: {}]
  %s5 = inlined_call_operand.vmem [shape: s32[1,2], index: 5, kind: input, shape index: {}]
  %s6 = inlined_call_operand.vmem [shape: s32[1,2], index: 6, kind: input, shape index: {}]
  %s7 = inlined_call_operand.hbm [shape: f32[1,2], index: 7, kind: output, shape index: {}]
  %s8 = sld [smem:[#allocation0]]
  $region42: #{tpu_custom_call.1} parent=0
    _
  %s10 = ssub.s32 1, %s8
  %s11 = scalar_select 0, %s10, %s8
  $region1: #{tpu_custom_call.1} parent=0
    #allocation2 [shape = 'u8[512]{0}', space=vmem, size = 0x400, scoped, tag = 'output window, operand 0, single buffered']
    #allocation3 [shape = 's32[1]{0}', space=sflag, size = 0x4, scoped, tag = 'scoped memory for tpu_custom_call.1']
    %12 = vsyncpa [#allocation3], 0
    // Predicated region
    $region2: #{tpu_custom_call.1} parent=1 // pred_check
      _
    $region3: #{tpu_custom_call.1} parent=1 // pred_check_branch
      %14 = sbr.rel (0) target = $region5
    $region4: #{tpu_custom_call.1} parent=1 // pred_region
      _
    $region5: #{tpu_custom_call.1} parent=1 // pred_fallthru
      _
    // Predicated region
    $region6: #{tpu_custom_call.1} parent=1 // pred_check
      _
    $region7: #{tpu_custom_call.1} parent=1 // pred_check_branch
      %16 = sbr.rel (0) target = $region9
    $region8: #{tpu_custom_call.1} parent=1 // pred_region
      _
    $region9: #{tpu_custom_call.1} parent=1 // pred_fallthru
      _
    // Predicated region
    $region10: #{tpu_custom_call.1} parent=1 // pred_check
      _
    $region11: #{tpu_custom_call.1} parent=1 // pred_check_branch
      %18 = sbr.rel (0) target = $region13
    $region12: #{tpu_custom_call.1} parent=1 // pred_region
      _
    $region13: #{tpu_custom_call.1} parent=1 // pred_fallthru
      _
    // Predicated region
    $region14: #{tpu_custom_call.1} parent=1 // pred_check
      _
    $region15: #{tpu_custom_call.1} parent=1 // pred_check_branch
      %20 = sbr.rel (0) target = $region17
    $region16: #{tpu_custom_call.1} parent=1 // pred_region
      _
    $region17: #{tpu_custom_call.1} parent=1 // pred_fallthru
      _
    // Predicated region
    $region18: #{tpu_custom_call.1} parent=1 // pred_check
      _
    $region19: #{tpu_custom_call.1} parent=1 // pred_check_branch
      %22 = sbr.rel (0) target = $region21
    $region20: #{tpu_custom_call.1} parent=1 // pred_region
      _
    $region21: #{tpu_custom_call.1} parent=1 // pred_fallthru
      _
    // Predicated region
    $region22: #{tpu_custom_call.1} parent=1 // pred_check
      _
    $region23: #{tpu_custom_call.1} parent=1 // pred_check_branch
      %24 = sbr.rel (0) target = $region25
    $region24: #{tpu_custom_call.1} parent=1 // pred_region
      _
    $region25: #{tpu_custom_call.1} parent=1 // pred_fallthru
      _
    // Predicated region
    $region26: #{tpu_custom_call.1} parent=1 // pred_check
      _
    $region27: #{tpu_custom_call.1} parent=1 // pred_check_branch
      %26 = sbr.rel (0) target = $region29
    $region28: #{tpu_custom_call.1} parent=1 // pred_region
      _
    $region29: #{tpu_custom_call.1} parent=1 // pred_fallthru
      _
    %v28 = vld [vmem:[%s1] sm:$0xf]
    %v29 = vld [vmem:[%s1 + $0x4] sm:$0xf]
    %v30 = vld [vmem:[%s1 + $0x8] sm:$0xf]
    %v31 = vld [vmem:[%s1 + $0xc] sm:$0xf]
    %v32 = vld [vmem:[%s0] sm:$0xf]
    %v33 = vld [vmem:[%s0 + $0x4] sm:$0xf]
    %v34 = vld [vmem:[%s0 + $0x8] sm:$0xf]
    %v35 = vld [vmem:[%s0 + $0xc] sm:$0xf]
    %v36 = vld [vmem:[%s2] sm:$0xff]
    %v37 = vld [vmem:[%s2 + $0x8] sm:$0xff]
    %v38 = vld [vmem:[%s2 + $0x10] sm:$0xff]
    %v39 = vld [vmem:[%s2 + $0x18] sm:$0xff]
    %41 = vset.pattern.permute.xlu0 0
    %42 = vperm.xlu0 %41, %v36
    %v43 = vpop.permute.xlu0 %42
    %46 = vset.pattern.permute.xlu0 0
    %47 = vperm.xlu0 %46, %v37
    %v48 = vpop.permute.xlu0 %47
    %51 = vset.pattern.permute.xlu0 0
    %52 = vperm.xlu0 %51, %v38
    %v53 = vpop.permute.xlu0 %52
    %56 = vset.pattern.permute.xlu0 0
    %57 = vperm.xlu0 %56, %v39
    %v58 = vpop.permute.xlu0 %57
    %v64 = vunpack.c.l.b16 %v28
    %v65 = vunpack.c.l.b16 %v29
    %v66 = vunpack.c.l.b16 %v30
    %v67 = vunpack.c.l.b16 %v31
    %v68 = vpack.c.b16 %v65, %v64
    %v69 = vpack.c.b16 %v67, %v66
    %v74 = vunpack.c.l.b16 %v32
    %v75 = vunpack.c.l.b16 %v33
    %v76 = vunpack.c.l.b16 %v34
    %v77 = vunpack.c.l.b16 %v35
    %v78 = vpack.c.b16 %v75, %v74
    %v79 = vpack.c.b16 %v77, %v76
    %vm82 = vcmask 261120
    %v84 = vsel %vm82, %v68, 0
    %v87 = vsel %vm82, %v69, 0
    %89 = vmatprep.subr.bf16.mxu0 0
    %90 = vmatpush1.bf16.msra.mxu0 0
    %91 = vmatprep.subr.bf16.mxu0 0
    %92 = vmatpush1.bf16.msra.mxu0 0
    %93 = vmatprep.subr.bf16.mxu0 0
    %94 = vmatpush1.bf16.msra.mxu0 0
    %95 = vmatprep.subr.bf16.mxu0 0
    %96 = vmatpush1.bf16.msra.mxu0 0
    %97 = vmatprep.subr.bf16.mxu0 0
    %98 = vmatpush1.bf16.msra.mxu0 0
    %99 = vmatprep.subr.bf16.mxu0 0
    %100 = vmatpush1.bf16.msra.mxu0 0
    %101 = vmatprep.subr.bf16.mxu0 0
    %102 = vmatpush1.bf16.msra.mxu0 %v79
    %103 = vmatprep.subr.bf16.mxu0 0
    %104 = vmatpush1.bf16.msra.mxu0 %v78
    %105 = vmatprep.subr.bf16.mxu0 0
    %106 = vmatpush2.bf16.msra.mxu0 0
    %107 = vmatprep.subr.bf16.mxu0 0
    %108 = vmatpush2.bf16.msra.mxu0 0
    %109 = vmatprep.subr.bf16.mxu0 0
    %110 = vmatpush2.bf16.msra.mxu0 0
    %111 = vmatprep.subr.bf16.mxu0 0
    %112 = vmatpush2.bf16.msra.mxu0 0
    %113 = vmatprep.subr.bf16.mxu0 0
    %114 = vmatpush2.bf16.msra.mxu0 0
    %115 = vmatprep.subr.bf16.mxu0 0
    %116 = vmatpush2.bf16.msra.mxu0 0
    %117 = vmatprep.subr.bf16.mxu0 0
    %118 = vmatpush2.bf16.msra.mxu0 0
    %119 = vmatprep.subr.bf16.mxu0 0
    %120 = vmatpush2.bf16.msra.mxu0 0
    %121 = vmatprep.mubr.bf16.mxu0 0
    %122 = vmatmul.mubr.bf16.gmra.mxu0 %v84
    %v123 = vpop.f32.mrf.mxu0
    %v124 = vadd.f32 %v43, %v123
    %v125 = vpop.f32.mrf.mxu0
    %v126 = vpop.f32.mrf.mxu0
    %v127 = vadd.f32 %v48, %v126
    %v128 = vpop.f32.mrf.mxu0
    %129 = vmatprep.mubr.bf16.mxu0 0
    %130 = vmatmul.mubr.bf16.gmra.mxu0 %v87
    %v131 = vpop.f32.mrf.mxu0
    %v132 = vadd.f32 %v53, %v131
    %v133 = vpop.f32.mrf.mxu0
    %v134 = vpop.f32.mrf.mxu0
    %v135 = vadd.f32 %v58, %v134
    %v136 = vpop.f32.mrf.mxu0
    %137 = vdwg.mxu0
    %v138 = vmax.f32 %v124, 0.0
    %v139 = vmax.f32 %v127, 0.0
    %v140 = vmax.f32 %v132, 0.0
    %v141 = vmax.f32 %v135, 0.0
    %v142 = vld [vmem:[%s3] sm:$0xff]
    %v143 = vld [vmem:[%s3 + $0x8] sm:$0xff]
    %v144 = vld [vmem:[%s3 + $0x10] sm:$0xff]
    %v145 = vld [vmem:[%s3 + $0x18] sm:$0xff]
    %147 = vset.pattern.permute.xlu0 0
    %148 = vperm.xlu0 %147, %v142
    %v149 = vpop.permute.xlu0 %148
    %152 = vset.pattern.permute.xlu0 0
    %153 = vperm.xlu0 %152, %v143
    %v154 = vpop.permute.xlu0 %153
    %157 = vset.pattern.permute.xlu0 0
    %158 = vperm.xlu0 %157, %v144
    %v159 = vpop.permute.xlu0 %158
    %162 = vset.pattern.permute.xlu0 0
    %163 = vperm.xlu0 %162, %v145
    %v164 = vpop.permute.xlu0 %163
    %v166 = vmul.f32 %v138, %v149
    %v167 = vmul.f32 %v139, %v154
    %v168 = vmul.f32 %v140, %v159
    %v169 = vmul.f32 %v141, %v164
    %v170 = vadd.f32 %v166, %v167
    %v171 = vadd.f32 %v170, %v168
    %v172 = vadd.f32 %v171, %v169
    %v173 = vrot.slane %v172, 4
    %v174 = vadd.f32 %v172, %v173
    %v175 = vrot.slane %v174, 2
    %v176 = vadd.f32 %v174, %v175
    %v177 = vrot.slane %v176, 1
    %v178 = vadd.f32 %v176, %v177
    %v179 = vld [vmem:[%s4] sm:$0xff]
    %v180 = vld [vmem:[%s4 + $0x8] sm:$0xf]
    %s181 = smul.u32 0, 128
    %v182 = vstv %s181
    %v183 = vsub.s32 %v179, %v182
    %v184 = vsub.s32 %v180, %v182
    %v185 = vlaneseq
    %v186 = vand.u32 %v185, 127
    %187 = vset.pattern.permute.xlu0 0
    %188 = vperm.xlu0 %187, %v183
    %v189 = vpop.permute.xlu0 %188
    %190 = vset.pattern.permute.xlu0 0
    %191 = vperm.xlu0 %190, %v184
    %v192 = vpop.permute.xlu0 %191
    %vm193 = vcmp.eq.s32.totalorder %v186, %v189
    %vm194 = vcmp.eq.s32.totalorder %v186, %v192
    %v195 = vsel %vm193, %v178, -3.4028235e+38
    %v196 = vsel %vm194, %v178, -3.4028235e+38
    %197 = vmax.xlane.f32.xlu0 %v195
    %v198 = vpop.xlane.xlu0 %197
    %vm199 = vcmask 1043456
    %v200 = vsel %vm199, %v196, -inf
    %201 = vmax.xlane.f32.xlu0 %v200
    %v202 = vpop.xlane.xlu0 %201
    %v203 = vlaneseq
    %v204 = vshrl.u32 %v203, 7
    %v205 = vadd.s32 %v204, 8
    %v206 = vld [vmem:[%s5] sm:$0x1]
    %v207 = vlaneseq
    %v208 = vshrl.u32 %v207, 7
    %v209 = vsub.s32 0, %v208
    %v210 = vrot.slane %v206, %v209
    %vm211 = vcmp.ge.s32.totalorder %v204, %v210
    %vm212 = vcmp.ge.s32.totalorder %v205, %v210
    %v213 = vld [vmem:[%s6] sm:$0x1]
    %v214 = vlaneseq
    %v215 = vshrl.u32 %v214, 7
    %v216 = vsub.s32 0, %v215
    %v217 = vrot.slane %v213, %v216
    %vm218 = vcmp.lt.s32.totalorder %v204, %v217
    %vm219 = vcmp.lt.s32.totalorder %v205, %v217
    %vm220 = vmand %vm211, %vm218
    %vm221 = vmand %vm212, %vm219
    %v222 = vsel %vm220, %v198, -3.4028235e+38
    %v223 = vsel %vm221, %v202, -3.4028235e+38
    %vm224 = vcmask 15360
    %v225 = vsel %vm224, %v222, -inf
    %vm226 = vcmask 11264
    %v227 = vsel %vm226, %v223, -inf
    %v228 = vmax.f32 %v225, %v227
    %v229 = vrot.slane %v228, 4
    %v230 = vmax.f32 %v228, %v229
    %v231 = vrot.slane %v230, 2
    %v232 = vmax.f32 %v230, %v231
    %v233 = vrot.slane %v232, 1
    %v234 = vmax.f32 %v232, %v233
    %p235 = scmp.eq.s32.totalorder 0, 0
    // Predicated region
    $region30: #{tpu_custom_call.1} parent=1 // pred_check
      %p236 = pneg %p235
    $region31: #{tpu_custom_call.1} parent=1 // pred_check_branch
      %238 = sbr.rel (%p236) target = $region33
    $region32: #{tpu_custom_call.1} parent=1 // pred_region
      %vm239 = vcmask 8192
      %240 = vst.msk [vmem:[#allocation2] sm:$0x1] %vm239, -3.4028235e+38
    $region33: #{tpu_custom_call.1} parent=1 // pred_fallthru
      _
    %v241 = vld [vmem:[#allocation2] sm:$0x1]
    %v242 = vmax.f32 %v241, %v234
    %vm243 = vcmask 8192
    %244 = vst.msk [vmem:[#allocation2] sm:$0x1] %vm243, %v242
    // Predicated region
    $region34: #{tpu_custom_call.1} parent=1 // pred_check
      _
    $region35: #{tpu_custom_call.1} parent=1 // pred_check_branch
      %246 = sbr.rel (0) target = $region37
    $region36: #{tpu_custom_call.1} parent=1 // pred_region
      %s248 = ssub.s32 16, 16
      %249 = vsyncadd [#allocation3], %s248
      %s251 = sshll.u32 [#allocation2], 4
      %s252 = int_to_ptr.vmem [resolvable:$true] %s251
      %254 = dma.vmem_to_hbm [thread:$0]  %s252, 16, %s7, [#allocation3]
    $region37: #{tpu_custom_call.1} parent=1 // pred_fallthru
      _
    // Predicated region
    $region38: #{tpu_custom_call.1} parent=1 // pred_check
      _
    $region39: #{tpu_custom_call.1} parent=1 // pred_check_branch
      %256 = sbr.rel (0) target = $region41
    $region40: #{tpu_custom_call.1} parent=1 // pred_region
      %257 = dma.done [#allocation3], 16
    $region41: #{tpu_custom_call.1} parent=1 // pred_fallthru
      _
    %258 = vsyncpa [#allocation3], 1

</llo_original>
